<compile_context>
chip_gen: v5e
topology: v5e:2x2
jax: 0.10.0
libtpu: 0.0.40
codegen_flags: <defaults>
</compile_context>

<pallas_src>
import jax
import jax.numpy as jnp
from jax import lax
from jax.experimental import pallas as pl
from jax.experimental.pallas import tpu as pltpu

BN_EPS = 1e-5

# Conservative budget for keeping the conv output resident in VMEM:
# v7x has 64 MiB physical VMEM per core (v5e/v6e: 128 MiB); 32 MiB leaves
# headroom for pipeline buffers on every generation.
_FUSED_VMEM_BUDGET = 32 << 20


def _round_up(x, m):
    return (x + m - 1) // m * m


def _vmem_limit(working_set_bytes):
    # Explicit scoped-VMEM request: 2x the estimated working set, floor 16 MiB
    # (v5e scoped default), capped at 48 MiB to stay safe on v7x (64 MiB phys).
    return int(min(max(2 * working_set_bytes, 16 << 20), 48 << 20))


def _pick_hw_tile(hw, kp, cp, max_bytes=4 << 20):
    """Largest multiple-of-128 divisor of H*W whose per-step buffers fit."""
    assert hw % 128 == 0, "H*W must be a multiple of 128 for this kernel"
    best, t = 128, 128
    while t <= hw:
        if hw % t == 0:
            per_step = 2 * kp * t * 2 + 3 * cp * t * 4  # patch dbuf + out dbuf + y tile
            if per_step <= max_bytes:
                best = t
        t += 128
    return best


def _build_gemm_operands(x_nchw, weight_oihw, cp, kp):
    """im2col (K, M) and weights (Cp, Kp), both bf16, tap-major K ordering."""
    B, Cin, H, W = x_nchw.shape
    Cout, Cin2, KH, KW = weight_oihw.shape
    K = KH * KW * Cin2
    M = B * H * W

    # coord channels: channel Cin is x (varies along W), channel Cin+1 is y
    # (varies along H) -- matches torch.cat([x, y], 1).
    xc = jnp.broadcast_to(jnp.linspace(-1.0, 1.0, W, dtype=jnp.float32)[None, :], (H, W))
    yc = jnp.broadcast_to(jnp.linspace(-1.0, 1.0, H, dtype=jnp.float32)[:, None], (H, W))
    coord = jnp.broadcast_to(jnp.stack([xc, yc], 0)[:, None], (2, B, H, W))

    # Channel-leading layout so the im2col lands directly as (K, M) with no big
    # XLA transpose; cast to bf16 BEFORE the pad/9-slice concat.
    x_cl = jnp.transpose(x_nchw, (1, 0, 2, 3)).astype(jnp.bfloat16)          # (Cin, B, H, W)
    x_aug = jnp.concatenate([x_cl, coord.astype(jnp.bfloat16)], axis=0)      # (Cin2, B, H, W)
    xp = jnp.pad(x_aug, ((0, 0), (0, 0), (1, 1), (1, 1)))
    patches = jnp.stack(
        [xp[:, :, kh:kh + H, kw:kw + W] for kh in range(KH) for kw in range(KW)],
        axis=0,
    ).reshape(K, M)                                                          # tap-major K
    patches = jnp.pad(patches, ((0, kp - K), (0, 0)))                        # (Kp, M) bf16

    # Weights -> (Cp, Kp); K ordering (kh, kw, cin2) matches `patches`.
    w_t = jnp.transpose(weight_oihw, (0, 2, 3, 1)).reshape(Cout, K).astype(jnp.float32)
    w_pad = jnp.pad(w_t, ((0, cp - Cout), (0, kp - K))).astype(jnp.bfloat16)  # (Cp, Kp)
    return patches, w_pad


def coordconv_forward(x_nchw, weight_oihw, gamma, beta, *, force_two_pass=False):
    """x: (B, Cin, H, W); weight: (Cout, Cin+2, 3, 3) -> (B, Cout, H, W)."""
    B, Cin, H, W = x_nchw.shape
    Cout, Cin2, KH, KW = weight_oihw.shape
    assert Cin2 == Cin + 2 and KH == 3 and KW == 3
    assert (H * W) % 128 == 0, "H*W must be a multiple of 128"

    HW = H * W
    M = B * HW
    K = 9 * Cin2
    Cp = _round_up(Cout, 16)      # bf16 sublane pack for the GEMM LHS; only sublane padding
    Kp = _round_up(K, 16)         # bf16 sublane pack for the patch tile (never 128)
    inv_count = 1.0 / float(M)

    patches, w_pad = _build_gemm_operands(x_nchw, weight_oihw, Cp, Kp)
    gamma_p = jnp.pad(gamma.astype(jnp.float32), (0, Cp - Cout)).reshape(Cp, 1)
    beta_p = jnp.pad(beta.astype(jnp.float32), (0, Cp - Cout)).reshape(Cp, 1)
    # NOTE: padded channels have zero weights -> sum=ssq=0 -> var=0 ->
    # scale = 0*rsqrt(eps) = 0, shift = 0: finite, outputs zero, and they are
    # sliced off before the store anyway.

    thw = _pick_hw_tile(HW, Kp, Cp)
    n_hw = HW // thw
    grid_m = B * n_hw

    fused_bytes = (Cp * M * 4            # VMEM-resident conv output
                   + 2 * Kp * thw * 2    # double-buffered patch tiles
                   + 2 * Cout * thw * 4  # double-buffered output tiles
                   + 2 * Cp * Kp * 2     # weights
                   + 4 * Cp * 4)         # stats / bn params
    use_fused = (not force_two_pass) and fused_bytes <= _FUSED_VMEM_BUDGET

    if use_fused:
        # ------------- single fused pass: GEMM+stats, then BN+ReLU -------------
        def fused_kernel(w_ref, p_ref, g_ref, bt_ref, o_ref, y_scr, sum_scr, ssq_scr):
            phase = pl.program_id(0)
            b = pl.program_id(1)
            j = pl.program_id(2)
            m_idx = b * n_hw + j

            @pl.when(phase == 0)
            def _():
                @pl.when(m_idx == 0)
                def _():
                    sum_scr[...] = jnp.zeros_like(sum_scr)
                    ssq_scr[...] = jnp.zeros_like(ssq_scr)

                acc = jnp.dot(w_ref[...], p_ref[...],
                              preferred_element_type=jnp.float32)        # (Cp, thw)
                y_scr[m_idx] = acc                                       # stays in VMEM
                sum_scr[...] += jnp.sum(acc, axis=1, keepdims=True)
                ssq_scr[...] += jnp.sum(acc * acc, axis=1, keepdims=True)

            @pl.when(phase == 1)
            def _():
                mu = sum_scr[...] * inv_count                            # (Cp, 1)
                var = jnp.maximum(ssq_scr[...] * inv_count - mu * mu, 0.0)
                scale = g_ref[...] * lax.rsqrt(var + BN_EPS)
                shift = bt_ref[...] - mu * scale
                y = y_scr[m_idx] * scale + shift                         # (Cp, thw)
                o_ref[0] = jnp.maximum(y[:Cout], 0.0)                    # NCHW tile

        out = pl.pallas_call(
            fused_kernel,
            out_shape=jax.ShapeDtypeStruct((B, Cout, HW), jnp.float32),
            grid=(2, B, n_hw),
            in_specs=[
                pl.BlockSpec((Cp, Kp), lambda p, b, j: (0, 0)),
                # phase 0: walk the M tiles; phase 1: park on the last tile (no re-DMA)
                pl.BlockSpec((Kp, thw),
                             lambda p, b, j: (0, (b * n_hw + j) * (1 - p) + (grid_m - 1) * p)),
                pl.BlockSpec((Cp, 1), lambda p, b, j: (0, 0)),
                pl.BlockSpec((Cp, 1), lambda p, b, j: (0, 0)),
            ],
            # phase 0: stay parked on block (0,0,0) (never written, never flushed);
            # phase 1: one lane-dense NCHW block per step.
            out_specs=pl.BlockSpec((1, Cout, thw), lambda p, b, j: (b * p, 0, j * p)),
            scratch_shapes=[
                pltpu.VMEM((grid_m, Cp, thw), jnp.float32),   # resident conv output
                pltpu.VMEM((Cp, 1), jnp.float32),             # per-channel sum
                pltpu.VMEM((Cp, 1), jnp.float32),             # per-channel sum of squares
            ],
            compiler_params=pltpu.CompilerParams(
                dimension_semantics=("arbitrary", "arbitrary", "arbitrary"),
                vmem_limit_bytes=_vmem_limit(fused_bytes)),
        )(w_pad, patches, gamma_p, beta_p)
        return out.reshape(B, Cout, H, W)

    # ------------- two-pass fallback (bf16 HBM intermediate) -------------
    two_pass_ws = 2 * Kp * thw * 2 + 2 * Cp * thw * 4 + 2 * Cout * thw * 4 + 2 * Cp * Kp * 2
    cp_params = lambda sem: pltpu.CompilerParams(
        dimension_semantics=sem, vmem_limit_bytes=_vmem_limit(two_pass_ws))

    def conv_stats_kernel(w_ref, p_ref, y_ref, sum_ref, ssq_ref):
        i = pl.program_id(0)

        @pl.when(i == 0)
        def _():
            sum_ref[...] = jnp.zeros_like(sum_ref)
            ssq_ref[...] = jnp.zeros_like(ssq_ref)

        acc = jnp.dot(w_ref[...], p_ref[...], preferred_element_type=jnp.float32)
        y_ref[...] = acc.astype(jnp.bfloat16)     # bf16 intermediate halves HBM traffic
        sum_ref[...] += jnp.sum(acc, axis=1, keepdims=True)
        ssq_ref[...] += jnp.sum(acc * acc, axis=1, keepdims=True)

    y_conv, csum, cssq = pl.pallas_call(
        conv_stats_kernel,
        out_shape=(jax.ShapeDtypeStruct((Cp, M), jnp.bfloat16),
                   jax.ShapeDtypeStruct((Cp, 1), jnp.float32),
                   jax.ShapeDtypeStruct((Cp, 1), jnp.float32)),
        grid=(grid_m,),
        in_specs=[
            pl.BlockSpec((Cp, Kp), lambda i: (0, 0)),
            pl.BlockSpec((Kp, thw), lambda i: (0, i)),
        ],
        out_specs=(
            pl.BlockSpec((Cp, thw), lambda i: (0, i)),
            pl.BlockSpec((Cp, 1), lambda i: (0, 0)),
            pl.BlockSpec((Cp, 1), lambda i: (0, 0)),
        ),
        compiler_params=cp_params(("arbitrary",)),
    )(w_pad, patches)

    mu = csum * inv_count
    var = jnp.maximum(cssq * inv_count - mu * mu, 0.0)
    scale = gamma_p * lax.rsqrt(var + BN_EPS)
    shift = beta_p - mu * scale

    def bn_relu_kernel(y_ref, s_ref, t_ref, o_ref):
        y = y_ref[...].astype(jnp.float32) * s_ref[...] + t_ref[...]
        o_ref[0] = jnp.maximum(y[:Cout], 0.0)

    out = pl.pallas_call(
        bn_relu_kernel,
        out_shape=jax.ShapeDtypeStruct((B, Cout, HW), jnp.float32),
        grid=(B, n_hw),
        in_specs=[
            pl.BlockSpec((Cp, thw), lambda b, j: (0, b * n_hw + j)),
            pl.BlockSpec((Cp, 1), lambda b, j: (0, 0)),
            pl.BlockSpec((Cp, 1), lambda b, j: (0, 0)),
        ],
        out_specs=pl.BlockSpec((1, Cout, thw), lambda b, j: (b, 0, j)),
        compiler_params=cp_params(("parallel", "parallel")),
    )(y_conv, scale, shift)
    return out.reshape(B, Cout, H, W)


def _reference(x_nchw, weight_oihw, gamma, beta):
    """Pure-JAX f32 reference of the same forward pass."""
    B, Cin, H, W = x_nchw.shape
    Cout = weight_oihw.shape[0]
    xcoord = jnp.broadcast_to(jnp.linspace(-1.0, 1.0, W, dtype=jnp.float32)[None, :], (H, W))
    ycoord = jnp.broadcast_to(jnp.linspace(-1.0, 1.0, H, dtype=jnp.float32)[:, None], (H, W))
    coord = jnp.broadcast_to(jnp.stack([xcoord, ycoord], 0)[None], (B, 2, H, W))
    xa = jnp.concatenate([x_nchw.astype(jnp.float32), coord], axis=1)
    y = lax.conv_general_dilated(
        xa, weight_oihw.astype(jnp.float32),
        window_strides=(1, 1), padding=((1, 1), (1, 1)),
        dimension_numbers=("NCHW", "OIHW", "NCHW"))
    mu = jnp.mean(y, axis=(0, 2, 3), keepdims=True)
    var = jnp.mean((y - mu) ** 2, axis=(0, 2, 3), keepdims=True)
    yn = (y - mu) * lax.rsqrt(var + BN_EPS)
    yn = yn * gamma.reshape(1, Cout, 1, 1) + beta.reshape(1, Cout, 1, 1)
    return jnp.maximum(yn, 0.0)


if __name__ == "__main__":
    B, Cin, H, W = 2, 4, 16, 16
    Cout = 8

    key = jax.random.PRNGKey(0)
    kx, kw = jax.random.split(key)
    x = jax.random.normal(kx, (B, Cin, H, W), dtype=jnp.float32)
    weight = jax.random.normal(kw, (Cout, Cin + 2, 3, 3), dtype=jnp.float32) * 0.1
    gamma = jnp.ones((Cout,), jnp.float32)
    beta = jnp.zeros((Cout,), jnp.float32)

    fwd = jax.jit(coordconv_forward, static_argnames=("force_two_pass",))
    ref = _reference(x, weight, gamma, beta)

    # Primary (fused, VMEM-resident) path.
    out = jax.block_until_ready(fwd(x, weight, gamma, beta, force_two_pass=False))
    assert out.shape == (B, Cout, H, W)
    # bf16 GEMM inputs (f32 accumulation) -> loosened tolerance vs the f32 reference.
    assert jnp.allclose(out, ref, atol=5e-2, rtol=5e-2), \
        float(jnp.max(jnp.abs(out - ref)))

    # Exercise the two-pass (large-shape) fallback once as well.
    out2 = jax.block_until_ready(fwd(x, weight, gamma, beta, force_two_pass=True))
    assert jnp.allclose(out2, ref, atol=5e-2, rtol=5e-2), \
        float(jnp.max(jnp.abs(out2 - ref)))

    print("KERNEL_OK")
</pallas_src>

<mosaic_0001>
module attributes {stable_mosaic.version = 11 : i64} {
  func.func @fused_kernel(%arg0: i32, %arg1: i32, %arg2: i32, %arg3: memref<16x64xbf16, #tpu.memory_space<vmem>>, %arg4: memref<64x256xbf16, #tpu.memory_space<vmem>>, %arg5: memref<16x1xf32, #tpu.memory_space<vmem>>, %arg6: memref<16x1xf32, #tpu.memory_space<vmem>>, %arg7: memref<1x8x256xf32, #tpu.memory_space<vmem>>, %arg8: memref<2x16x256xf32, #tpu.memory_space<vmem>>, %arg9: memref<16x1xf32, #tpu.memory_space<vmem>>, %arg10: memref<16x1xf32, #tpu.memory_space<vmem>>) attributes {dimension_semantics = [#tpu.dimension_semantics<arbitrary>, #tpu.dimension_semantics<arbitrary>, #tpu.dimension_semantics<arbitrary>], iteration_bounds = array<i64: 2, 2, 1>, scalar_prefetch = 0 : i64, scratch_operands = 3 : i64, tpu.core_type = #tpu.core_type<tc>, window_params = [{pipeline_mode = #tpu.pipeline_mode<synchronous>, transform_indices = @transform_0, window_bounds = array<i64: 16, 64>}, {transform_indices = @transform_1, window_bounds = array<i64: 64, 256>}, {pipeline_mode = #tpu.pipeline_mode<synchronous>, transform_indices = @transform_2, window_bounds = array<i64: 16, 1>}, {pipeline_mode = #tpu.pipeline_mode<synchronous>, transform_indices = @transform_3, window_bounds = array<i64: 16, 1>}, {transform_indices = @transform_4, window_bounds = array<i64: 1, 8, 256>}]} {
    %c1_i32 = arith.constant 1 : i32
    %0 = arith.muli %arg1, %c1_i32 : i32
    %1 = arith.addi %0, %arg2 : i32
    %c0_i32 = arith.constant 0 : i32
    %2 = arith.cmpi eq, %arg0, %c0_i32 : i32
    %3 = arith.extui %2 : i1 to i32
    %c0_i32_0 = arith.constant 0 : i32
    %4 = arith.cmpi ne, %3, %c0_i32_0 : i32
    scf.if %4 {
      %c0_i32_3 = arith.constant 0 : i32
      %8 = arith.cmpi eq, %1, %c0_i32_3 : i32
      %9 = arith.extui %8 : i1 to i32
      %c0_i32_4 = arith.constant 0 : i32
      %10 = arith.cmpi ne, %9, %c0_i32_4 : i32
      scf.if %10 {
        %cst_20 = arith.constant 0.000000e+00 : f32
        %29 = vector.broadcast %cst_20 : f32 to vector<16x1xf32>
        %c0_21 = arith.constant 0 : index
        %c0_22 = arith.constant 0 : index
        %30 = vector.load %arg9[%c0_21, %c0_22] : memref<16x1xf32, #tpu.memory_space<vmem>>, vector<16x1xf32>
        tpu.vector_store %arg9[%c0_21, %c0_22], %29 {strides = array<i32>} : memref<16x1xf32, #tpu.memory_space<vmem>>, vector<16x1xf32>,
        %cst_23 = arith.constant 0.000000e+00 : f32
        %31 = vector.broadcast %cst_23 : f32 to vector<16x1xf32>
        %c0_24 = arith.constant 0 : index
        %c0_25 = arith.constant 0 : index
        %32 = vector.load %arg10[%c0_24, %c0_25] : memref<16x1xf32, #tpu.memory_space<vmem>>, vector<16x1xf32>
        tpu.vector_store %arg10[%c0_24, %c0_25], %31 {strides = array<i32>} : memref<16x1xf32, #tpu.memory_space<vmem>>, vector<16x1xf32>,
      } else {
      }
      %c0 = arith.constant 0 : index
      %c0_5 = arith.constant 0 : index
      %11 = vector.load %arg3[%c0, %c0_5] : memref<16x64xbf16, #tpu.memory_space<vmem>>, vector<16x64xbf16>
      %c0_6 = arith.constant 0 : index
      %c0_7 = arith.constant 0 : index
      %12 = vector.load %arg4[%c0_6, %c0_7] : memref<64x256xbf16, #tpu.memory_space<vmem>>, vector<64x256xbf16>
      %cst = arith.constant dense<0.000000e+00> : vector<16x256xf32>
      %13 = tpu.matmul %11, %12, %cst {dimension_numbers = #tpu.dot_dimension_numbers<[1], [0], [0], [1], [0, 0, 1, 1], [], []>} : vector<16x64xbf16>, vector<64x256xbf16>, vector<16x256xf32> -> vector<16x256xf32>
      %14 = arith.index_cast %1 : i32 to index
      %c0_8 = arith.constant 0 : index
      %c0_9 = arith.constant 0 : index
      %15 = vector.load %arg8[%14, %c0_8, %c0_9] : memref<2x16x256xf32, #tpu.memory_space<vmem>>, vector<1x16x256xf32>
      %16 = vector.shape_cast %15 : vector<1x16x256xf32> to vector<16x256xf32>
      %17 = vector.shape_cast %13 : vector<16x256xf32> to vector<1x16x256xf32>
      tpu.vector_store %arg8[%14, %c0_8, %c0_9], %17 {strides = array<i32>} : memref<2x16x256xf32, #tpu.memory_space<vmem>>, vector<1x16x256xf32>,
      %c0_10 = arith.constant 0 : index
      %c0_11 = arith.constant 0 : index
      %18 = vector.load %arg9[%c0_10, %c0_11] : memref<16x1xf32, #tpu.memory_space<vmem>>, vector<16x1xf32>
      %cst_12 = arith.constant dense<0.000000e+00> : vector<16xf32>
      %19 = vector.multi_reduction <add>, %13, %cst_12 [1] : vector<16x256xf32> to vector<16xf32>
      %20 = vector.shape_cast %19 : vector<16xf32> to vector<16x1xf32>
      %21 = arith.addf %18, %20 : vector<16x1xf32>
      %c0_13 = arith.constant 0 : index
      %c0_14 = arith.constant 0 : index
      %22 = vector.load %arg9[%c0_13, %c0_14] : memref<16x1xf32, #tpu.memory_space<vmem>>, vector<16x1xf32>
      tpu.vector_store %arg9[%c0_13, %c0_14], %21 {strides = array<i32>} : memref<16x1xf32, #tpu.memory_space<vmem>>, vector<16x1xf32>,
      %c0_15 = arith.constant 0 : index
      %c0_16 = arith.constant 0 : index
      %23 = vector.load %arg10[%c0_15, %c0_16] : memref<16x1xf32, #tpu.memory_space<vmem>>, vector<16x1xf32>
      %24 = arith.mulf %13, %13 : vector<16x256xf32>
      %cst_17 = arith.constant dense<0.000000e+00> : vector<16xf32>
      %25 = vector.multi_reduction <add>, %24, %cst_17 [1] : vector<16x256xf32> to vector<16xf32>
      %26 = vector.shape_cast %25 : vector<16xf32> to vector<16x1xf32>
      %27 = arith.addf %23, %26 : vector<16x1xf32>
      %c0_18 = arith.constant 0 : index
      %c0_19 = arith.constant 0 : index
      %28 = vector.load %arg10[%c0_18, %c0_19] : memref<16x1xf32, #tpu.memory_space<vmem>>, vector<16x1xf32>
      tpu.vector_store %arg10[%c0_18, %c0_19], %27 {strides = array<i32>} : memref<16x1xf32, #tpu.memory_space<vmem>>, vector<16x1xf32>,
    } else {
    }
    %c1_i32_1 = arith.constant 1 : i32
    %5 = arith.cmpi eq, %arg0, %c1_i32_1 : i32
    %6 = arith.extui %5 : i1 to i32
    %c0_i32_2 = arith.constant 0 : i32
    %7 = arith.cmpi ne, %6, %c0_i32_2 : i32
    scf.if %7 {
      %c0 = arith.constant 0 : index
      %c0_3 = arith.constant 0 : index
      %8 = vector.load %arg9[%c0, %c0_3] : memref<16x1xf32, #tpu.memory_space<vmem>>, vector<16x1xf32>
      %cst = arith.constant 0.001953125 : f32
      %9 = vector.broadcast %cst : f32 to vector<16x1xf32>
      %10 = arith.mulf %8, %9 : vector<16x1xf32>
      %c0_4 = arith.constant 0 : index
      %c0_5 = arith.constant 0 : index
      %11 = vector.load %arg10[%c0_4, %c0_5] : memref<16x1xf32, #tpu.memory_space<vmem>>, vector<16x1xf32>
      %cst_6 = arith.constant 0.001953125 : f32
      %12 = vector.broadcast %cst_6 : f32 to vector<16x1xf32>
      %13 = arith.mulf %11, %12 : vector<16x1xf32>
      %14 = arith.mulf %10, %10 : vector<16x1xf32>
      %15 = arith.subf %13, %14 : vector<16x1xf32>
      %cst_7 = arith.constant 0.000000e+00 : f32
      %16 = vector.broadcast %cst_7 : f32 to vector<16x1xf32>
      %17 = arith.maximumf %15, %16 : vector<16x1xf32>
      %c0_8 = arith.constant 0 : index
      %c0_9 = arith.constant 0 : index
      %18 = vector.load %arg5[%c0_8, %c0_9] : memref<16x1xf32, #tpu.memory_space<vmem>>, vector<16x1xf32>
      %cst_10 = arith.constant 9.99999974E-6 : f32
      %19 = vector.broadcast %cst_10 : f32 to vector<16x1xf32>
      %20 = arith.addf %17, %19 : vector<16x1xf32>
      %21 = math.rsqrt %20 : vector<16x1xf32>
      %22 = arith.mulf %18, %21 : vector<16x1xf32>
      %c0_11 = arith.constant 0 : index
      %c0_12 = arith.constant 0 : index
      %23 = vector.load %arg6[%c0_11, %c0_12] : memref<16x1xf32, #tpu.memory_space<vmem>>, vector<16x1xf32>
      %24 = arith.mulf %10, %22 : vector<16x1xf32>
      %25 = arith.subf %23, %24 : vector<16x1xf32>
      %26 = arith.index_cast %1 : i32 to index
      %c0_13 = arith.constant 0 : index
      %c0_14 = arith.constant 0 : index
      %27 = vector.load %arg8[%26, %c0_13, %c0_14] : memref<2x16x256xf32, #tpu.memory_space<vmem>>, vector<1x16x256xf32>
      %28 = vector.shape_cast %27 : vector<1x16x256xf32> to vector<16x256xf32>
      %29 = vector.broadcast %22 : vector<16x1xf32> to vector<16x256xf32>
      %30 = arith.mulf %28, %29 : vector<16x256xf32>
      %31 = vector.broadcast %25 : vector<16x1xf32> to vector<16x256xf32>
      %32 = arith.addf %30, %31 : vector<16x256xf32>
      %33 = vector.extract_strided_slice %32 {offsets = [0, 0], sizes = [8, 256], strides = [1, 1]} : vector<16x256xf32> to vector<8x256xf32>
      %cst_15 = arith.constant 0.000000e+00 : f32
      %34 = vector.broadcast %cst_15 : f32 to vector<8x256xf32>
      %35 = arith.maximumf %33, %34 : vector<8x256xf32>
      %c0_16 = arith.constant 0 : index
      %c0_17 = arith.constant 0 : index
      %c0_18 = arith.constant 0 : index
      %36 = vector.load %arg7[%c0_16, %c0_17, %c0_18] : memref<1x8x256xf32, #tpu.memory_space<vmem>>, vector<1x8x256xf32>
      %37 = vector.shape_cast %36 : vector<1x8x256xf32> to vector<8x256xf32>
      %38 = vector.shape_cast %35 : vector<8x256xf32> to vector<1x8x256xf32>
      tpu.vector_store %arg7[%c0_16, %c0_17, %c0_18], %38 {strides = array<i32>} : memref<1x8x256xf32, #tpu.memory_space<vmem>>, vector<1x8x256xf32>,
    } else {
    }
    return
  }
  func.func @transform_0(%arg0: i32, %arg1: i32, %arg2: i32) -> (i32, i32) {
    %c0_i32 = arith.constant 0 : i32
    %c0_i32_0 = arith.constant 0 : i32
    %c0_i32_1 = arith.constant 0 : i32
    return %c0_i32, %c0_i32_0 : i32, i32
  }
  func.func @transform_1(%arg0: i32, %arg1: i32, %arg2: i32) -> (i32, i32) {
    %c1_i32 = arith.constant 1 : i32
    %0 = arith.muli %arg1, %c1_i32 : i32
    %1 = arith.addi %0, %arg2 : i32
    %c1_i32_0 = arith.constant 1 : i32
    %2 = arith.subi %c1_i32_0, %arg0 : i32
    %3 = arith.muli %1, %2 : i32
    %c1_i32_1 = arith.constant 1 : i32
    %4 = arith.muli %c1_i32_1, %arg0 : i32
    %5 = arith.addi %3, %4 : i32
    %c0_i32 = arith.constant 0 : i32
    %c0_i32_2 = arith.constant 0 : i32
    return %c0_i32, %5 : i32, i32
  }
  func.func @transform_2(%arg0: i32, %arg1: i32, %arg2: i32) -> (i32, i32) {
    %c0_i32 = arith.constant 0 : i32
    %c0_i32_0 = arith.constant 0 : i32
    %c0_i32_1 = arith.constant 0 : i32
    return %c0_i32, %c0_i32_0 : i32, i32
  }
  func.func @transform_3(%arg0: i32, %arg1: i32, %arg2: i32) -> (i32, i32) {
    %c0_i32 = arith.constant 0 : i32
    %c0_i32_0 = arith.constant 0 : i32
    %c0_i32_1 = arith.constant 0 : i32
    return %c0_i32, %c0_i32_0 : i32, i32
  }
  func.func @transform_4(%arg0: i32, %arg1: i32, %arg2: i32) -> (i32, i32, i32) {
    %0 = arith.muli %arg1, %arg0 : i32
    %1 = arith.muli %arg2, %arg0 : i32
    %c0_i32 = arith.constant 0 : i32
    %c0_i32_0 = arith.constant 0 : i32
    return %0, %c0_i32, %1 : i32, i32, i32
  }
}

</mosaic_0001>

<llo_original>
// kernel: coordconv_forward.1
$region0: #{coordconv_forward.1}
  #allocation0 [shape = 'u32[]', space=smem, size = 0x4, offset = 0x4, fixed_abs, tag = 'smem constant byte address 0x4 - core index']
  #allocation1 [shape = 'u32[72,128]{1,0:T(1,128)}', space=vmem, size = 0x9000, scoped, tag = 'internal scratch']
  #allocation2 [shape = 'f32[2,16,256]{2,1,0:T(8,128)}', space=vmem, size = 0x8000, scoped, tag = 'scratch operand']
  #allocation3 [shape = 'f32[16,1]{1,0:T(8,128)}', space=vmem, size = 0x2000, scoped, tag = 'scratch operand']
  #allocation4 [shape = 'f32[16,1]{1,0:T(8,128)}', space=vmem, size = 0x2000, scoped, tag = 'scratch operand']
  %s0 = inlined_call_operand.vmem [shape: bf16[16,64], index: 0, kind: input, shape index: {}]
  %s1 = inlined_call_operand.vmem [shape: bf16[64,512], index: 1, kind: input, shape index: {}]
  %s2 = inlined_call_operand.vmem [shape: f32[16,1], index: 2, kind: input, shape index: {}]
  %s3 = inlined_call_operand.vmem [shape: f32[16,1], index: 3, kind: input, shape index: {}]
  %s4 = inlined_call_operand.vmem [shape: f32[2,8,256], index: 4, kind: output, shape index: {}]
  %s5 = sld [smem:[#allocation0]]
  $region99: #{coordconv_forward.1} parent=0
    _
  %s7 = ssub.s32 1, %s5
  %s8 = scalar_select 0, %s7, %s5
  $region1: #{coordconv_forward.1} parent=0
    #allocation5 [shape = 'u8[65536]{0}', space=vmem, size = 0x10000, scoped, tag = 'input window, operand 1']
    loop: start=0, step=1, limit=6
    $region2: #{coordconv_forward.1} parent=1 // loop_pre_header
      _
    $region3: #{coordconv_forward.1} parent=1 // loop_header
      %s10 = sphi 0, %s14
      %p11 = scmp.ge.s32.totalorder %s10, 6
      %s17 = sphi 0, %s36
      %s18 = sphi 0, %s32
      %s19 = sphi 0, %s28
      %s20 = sphi 0, %s17
      %s21 = sphi 0, %s18
      %s22 = sphi 0, %s19
      %s23 = sphi 0, %s20
      %s24 = sphi 0, %s21
      %s25 = sphi 0, %s22
      %s37 = sphi 0, %s37
      %s39 = sphi 0, %s37
      %s40 = sphi 0, %s39
      %s54 = sphi 0, %s40
      %s68 = sphi 0, %s70
      %s71 = sphi 0, %s68
      %s72 = sphi 0, %s71
      %s88 = sphi 0, %s72
      %s92 = sphi 0, %s92
      %s94 = sphi 0, %s92
      %s95 = sphi 0, %s94
      %s109 = sphi 0, %s95
      %s113 = sphi 0, %s113
      %s115 = sphi 0, %s113
      %s116 = sphi 0, %s115
      %s130 = sphi 0, %s116
      %s142 = sphi 0, %s144
      %s145 = sphi 0, %s142
      %s146 = sphi 0, %s145
      %s162 = sphi 0, %s146
    $region4: #{coordconv_forward.1} parent=1 // loop_header_branch
      %13 = sbr.rel (%p11) target = $region8
    $region5: #{coordconv_forward.1} parent=1 // loop_body
      %s15 = ssub.s32 %s10, 1
      %s16 = ssub.s32 %s10, 2
      %s26 = sadd.s32 1, %s19
      %p27 = scmp.ge.s32.totalorder %s26, 1
      %s28 = scalar_select %p27, 0, %s26
      %s29 = sadd.s32 1, %s18
      %s30 = scalar_select %p27, %s29, %s18
      %p31 = scmp.ge.s32.totalorder %s30, 2
      %s32 = scalar_select %p31, 0, %s30
      %s33 = sadd.s32 1, %s17
      %s34 = scalar_select %p31, %s33, %s17
      %p35 = scmp.ge.s32.totalorder %s34, 2
      %s36 = scalar_select %p35, 0, %s34
      %s38 = sadd.s32 %s37, 1
      %p41 = scmp.eq.s32.totalorder %s10, 3
      %p42 = scmp.ne.s32.totalorder %s37, %s39
      %p43 = scmp.eq.s32.totalorder %s10, 0
      %p44 = por %p42, %p43
      %p45 = scmp.ne.s32.totalorder %s37, %s39
      %p46 = scmp.eq.s32.totalorder %s15, 3
      %p47 = por %p45, %p46
      %p48 = scmp.ne.s32.totalorder %s39, %s40
      %p49 = scmp.eq.s32.totalorder %s15, 0
      %p50 = por %p48, %p49
      %p51 = scmp.ne.s32.totalorder %s39, %s40
      %p52 = scmp.eq.s32.totalorder %s16, 3
      %p53 = por %p51, %p52
      %p55 = scmp.ne.s32.totalorder %s40, %s54
      %p56 = scmp.eq.s32.totalorder %s16, 0
      %p57 = por %p55, %p56
      %s58 = sadd.s32 %s18, %s19
      %s59 = ssub.s32 1, %s17
      %s60 = smul.u32 %s58, %s59
      %s61 = sadd.s32 %s60, %s17
      %s62 = sadd.s32 %s32, %s28
      %s63 = ssub.s32 1, %s36
      %s64 = smul.u32 %s62, %s63
      %s65 = sadd.s32 %s64, %s36
      %s66 = ssub.s32 %s61, %s65
      %p67 = scmp.eq.s32.totalorder %s66, 0
      %s69 = sadd.s32 %s68, 1
      %s70 = scalar_select %p67, %s68, %s69
      %p73 = pneg %p67
      %p74 = scmp.eq.s32.totalorder %s10, 3
      %p75 = por %p73, %p74
      %p76 = scmp.ne.s32.totalorder %s68, %s71
      %p77 = scmp.eq.s32.totalorder %s10, 0
      %p78 = por %p76, %p77
      %p79 = scmp.ne.s32.totalorder %s68, %s71
      %p80 = scmp.eq.s32.totalorder %s15, 3
      %p81 = por %p79, %p80
      %p82 = scmp.ne.s32.totalorder %s71, %s72
      %p83 = scmp.eq.s32.totalorder %s15, 0
      %p84 = por %p82, %p83
      %p85 = scmp.ne.s32.totalorder %s71, %s72
      %p86 = scmp.eq.s32.totalorder %s16, 3
      %p87 = por %p85, %p86
      %p89 = scmp.ne.s32.totalorder %s72, %s88
      %p90 = scmp.eq.s32.totalorder %s16, 0
      %p91 = por %p89, %p90
      %s93 = sadd.s32 %s92, 1
      %p96 = scmp.eq.s32.totalorder %s10, 3
      %p97 = scmp.ne.s32.totalorder %s92, %s94
      %p98 = scmp.eq.s32.totalorder %s10, 0
      %p99 = por %p97, %p98
      %p100 = scmp.ne.s32.totalorder %s92, %s94
      %p101 = scmp.eq.s32.totalorder %s15, 3
      %p102 = por %p100, %p101
      %p103 = scmp.ne.s32.totalorder %s94, %s95
      %p104 = scmp.eq.s32.totalorder %s15, 0
      %p105 = por %p103, %p104
      %p106 = scmp.ne.s32.totalorder %s94, %s95
      %p107 = scmp.eq.s32.totalorder %s16, 3
      %p108 = por %p106, %p107
      %p110 = scmp.ne.s32.totalorder %s95, %s109
      %p111 = scmp.eq.s32.totalorder %s16, 0
      %p112 = por %p110, %p111
      %s114 = sadd.s32 %s113, 1
      %p117 = scmp.eq.s32.totalorder %s10, 3
      %p118 = scmp.ne.s32.totalorder %s113, %s115
      %p119 = scmp.eq.s32.totalorder %s10, 0
      %p120 = por %p118, %p119
      %p121 = scmp.ne.s32.totalorder %s113, %s115
      %p122 = scmp.eq.s32.totalorder %s15, 3
      %p123 = por %p121, %p122
      %p124 = scmp.ne.s32.totalorder %s115, %s116
      %p125 = scmp.eq.s32.totalorder %s15, 0
      %p126 = por %p124, %p125
      %p127 = scmp.ne.s32.totalorder %s115, %s116
      %p128 = scmp.eq.s32.totalorder %s16, 3
      %p129 = por %p127, %p128
      %p131 = scmp.ne.s32.totalorder %s116, %s130
      %p132 = scmp.eq.s32.totalorder %s16, 0
      %p133 = por %p131, %p132
      %s134 = smul.u32 %s18, %s17
      %s135 = smul.u32 %s19, %s17
      %s136 = smul.u32 %s32, %s36
      %s137 = smul.u32 %s28, %s36
      %s138 = ssub.s32 %s134, %s136
      %s139 = ssub.s32 %s135, %s137
      %s140 = sor.u32 %s138, %s139
      %p141 = scmp.eq.s32.totalorder %s140, 0
      %s143 = sadd.s32 %s142, 1
      %s144 = scalar_select %p141, %s142, %s143
      %p147 = pneg %p141
      %p148 = scmp.eq.s32.totalorder %s10, 3
      %p149 = por %p147, %p148
      %p150 = scmp.ne.s32.totalorder %s142, %s145
      %p151 = scmp.eq.s32.totalorder %s10, 0
      %p152 = por %p150, %p151
      %p153 = scmp.ne.s32.totalorder %s142, %s145
      %p154 = scmp.eq.s32.totalorder %s15, 3
      %p155 = por %p153, %p154
      %p156 = scmp.ne.s32.totalorder %s145, %s146
      %p157 = scmp.eq.s32.totalorder %s15, 0
      %p158 = por %p156, %p157
      %p159 = scmp.ne.s32.totalorder %s145, %s146
      %p160 = scmp.eq.s32.totalorder %s16, 3
      %p161 = por %p159, %p160
      %p163 = scmp.ne.s32.totalorder %s146, %s162
      %p164 = scmp.eq.s32.totalorder %s16, 0
      %p165 = por %p163, %p164
      %p166 = scmp.le.s32.totalorder 1, %s10
      %p167 = scmp.lt.s32.totalorder %s10, 5
      %p168 = pnand %p166, %p167
      %p169 = pneg %p168
      // Predicated region
      $region9: #{coordconv_forward.1} parent=5 // pred_check
        _
      $region10: #{coordconv_forward.1} parent=5 // pred_check_branch
        %171 = sbr.rel (%p168) target = $region12
      $region11: #{coordconv_forward.1} parent=5 // pred_region
        %s172 = ssub.s32 %s10, 1
        // Predicated region
        $region13: #{coordconv_forward.1} parent=11 // pred_check
          %p173 = pneg %p50
        $region14: #{coordconv_forward.1} parent=11 // pred_check_branch
          %175 = sbr.rel (%p173) target = $region16
        $region15: #{coordconv_forward.1} parent=11 // pred_region
          _
        $region16: #{coordconv_forward.1} parent=11 // pred_fallthru
          _
        // Predicated region
        $region17: #{coordconv_forward.1} parent=11 // pred_check
          %p176 = pneg %p105
        $region18: #{coordconv_forward.1} parent=11 // pred_check_branch
          %178 = sbr.rel (%p176) target = $region20
        $region19: #{coordconv_forward.1} parent=11 // pred_region
          _
        $region20: #{coordconv_forward.1} parent=11 // pred_fallthru
          _
        // Predicated region
        $region21: #{coordconv_forward.1} parent=11 // pred_check
          %p179 = pneg %p126
        $region22: #{coordconv_forward.1} parent=11 // pred_check_branch
          %181 = sbr.rel (%p179) target = $region24
        $region23: #{coordconv_forward.1} parent=11 // pred_region
          _
        $region24: #{coordconv_forward.1} parent=11 // pred_fallthru
          _
      $region12: #{coordconv_forward.1} parent=5 // pred_fallthru
        _
      %p182 = scmp.lt.s32.totalorder %s10, 4
      // Predicated region
      $region25: #{coordconv_forward.1} parent=5 // pred_check
        %p183 = pneg %p182
      $region26: #{coordconv_forward.1} parent=5 // pred_check_branch
        %185 = sbr.rel (%p183) target = $region28
      $region27: #{coordconv_forward.1} parent=5 // pred_region
        // Predicated region
        $region29: #{coordconv_forward.1} parent=27 // pred_check
          %p186 = pneg %p78
        $region30: #{coordconv_forward.1} parent=27 // pred_check_branch
          %188 = sbr.rel (%p186) target = $region32
        $region31: #{coordconv_forward.1} parent=27 // pred_region
          %s189 = sand.u32 %s68, 1
          %s190 = sand.u32 %s68, 1
          %s191 = smul.addr %s190, 64
          %s192 = scalar_lea.vmem [#allocation5], %s191
          %s193 = sadd.s32 %s18, %s19
          %s194 = ssub.s32 1, %s17
          %s195 = smul.u32 %s193, %s194
          %s196 = sadd.s32 %s195, %s17
          %s197 = smul.u32 2, %s196
          %s198 = smul.addr %s197, 4
          %s199 = scalar_lea.vmem %s1, %s198
          // Predicated region
          $region33: #{coordconv_forward.1} parent=31 // pred_check
            _
          $region34: #{coordconv_forward.1} parent=31 // pred_check_branch
            %201 = sbr.rel (0) target = $region36
          $region35: #{coordconv_forward.1} parent=31 // pred_region
            // Predicated region
            $region37: #{coordconv_forward.1} parent=35 // pred_check
              _
            $region38: #{coordconv_forward.1} parent=35 // pred_check_branch
              %203 = sbr.rel (0) target = $region40
            $region39: #{coordconv_forward.1} parent=35 // pred_region
              // Predicated region
              $region52: #{coordconv_forward.1} parent=39 // pred_check
                _
              $region53: #{coordconv_forward.1} parent=39 // pred_check_branch
                %233 = sbr.rel (0) target = $region55
              $region54: #{coordconv_forward.1} parent=39 // pred_region
                loop: start=0, step=1, limit=1
                $region56: #{coordconv_forward.1} parent=54 // loop_pre_header
                  _
                $region57: #{coordconv_forward.1} parent=54 // loop_header
                  %s235 = sphi 0, %s239
                  %p236 = scmp.ge.s32.totalorder %s235, 1
                  %s240 = sphi %s199, %s199
                  %s241 = sphi %s192, %s192
                $region58: #{coordconv_forward.1} parent=54 // loop_header_branch
                  %238 = sbr.rel (%p236) target = $region62
                $region59: #{coordconv_forward.1} parent=54 // loop_body
                  %v242 = vld [vmem:[%s240] sm:$0xff]
                  %243 = vst [vmem:[%s241] sm:$0xff] %v242
                  %v244 = vld [vmem:[%s240 + $0x10] sm:$0xff]
                  %245 = vst [vmem:[%s241 + $0x8] sm:$0xff] %v244
                  %v246 = vld [vmem:[%s240 + $0x20] sm:$0xff]
                  %247 = vst [vmem:[%s241 + $0x10] sm:$0xff] %v246
                  %v248 = vld [vmem:[%s240 + $0x30] sm:$0xff]
                  %249 = vst [vmem:[%s241 + $0x18] sm:$0xff] %v248
                  %v250 = vld [vmem:[%s240 + $0x40] sm:$0xff]
                  %251 = vst [vmem:[%s241 + $0x20] sm:$0xff] %v250
                  %v252 = vld [vmem:[%s240 + $0x50] sm:$0xff]
                  %253 = vst [vmem:[%s241 + $0x28] sm:$0xff] %v252
                  %v254 = vld [vmem:[%s240 + $0x60] sm:$0xff]
                  %255 = vst [vmem:[%s241 + $0x30] sm:$0xff] %v254
                  %v256 = vld [vmem:[%s240 + $0x70] sm:$0xff]
                  %257 = vst [vmem:[%s241 + $0x38] sm:$0xff] %v256
                $region60: #{coordconv_forward.1} parent=54 // loop_footer
                  %s239 = sadd.s32 1, %s235
                $region61: #{coordconv_forward.1} parent=54 // loop_footer_branch
                  %234 = sbr.rel target = $region57
                $region62: #{coordconv_forward.1} parent=54 // loop_exit
                  _
              $region55: #{coordconv_forward.1} parent=39 // pred_fallthru
                _
              // Predicated region
              $region63: #{coordconv_forward.1} parent=39 // pred_check
                _
              $region64: #{coordconv_forward.1} parent=39 // pred_check_branch
                %259 = sbr.rel target = $region66
              $region65: #{coordconv_forward.1} parent=39 // pred_region
                _
              $region66: #{coordconv_forward.1} parent=39 // pred_fallthru
                _
            $region40: #{coordconv_forward.1} parent=35 // pred_fallthru
              _
            // Predicated region
            $region41: #{coordconv_forward.1} parent=35 // pred_check
              _
            $region42: #{coordconv_forward.1} parent=35 // pred_check_branch
              %205 = sbr.rel target = $region44
            $region43: #{coordconv_forward.1} parent=35 // pred_region
              %s207 = ssub.s32 256, 1
              loop: start=0, step=1, limit=1
              $region45: #{coordconv_forward.1} parent=43 // loop_pre_header
                _
              $region46: #{coordconv_forward.1} parent=43 // loop_header
                %s209 = sphi 0, %s213
                %p210 = scmp.ge.s32.totalorder %s209, 1
                %s214 = sphi %s199, %s199
                %s215 = sphi %s192, %s192
              $region47: #{coordconv_forward.1} parent=43 // loop_header_branch
                %212 = sbr.rel (%p210) target = $region51
              $region48: #{coordconv_forward.1} parent=43 // loop_body
                %v216 = vld [vmem:[%s214] sm:%s207]
                %217 = vst [vmem:[%s215] sm:%s207] %v216
                %v218 = vld [vmem:[%s214 + $0x10] sm:%s207]
                %219 = vst [vmem:[%s215 + $0x8] sm:%s207] %v218
                %v220 = vld [vmem:[%s214 + $0x20] sm:%s207]
                %221 = vst [vmem:[%s215 + $0x10] sm:%s207] %v220
                %v222 = vld [vmem:[%s214 + $0x30] sm:%s207]
                %223 = vst [vmem:[%s215 + $0x18] sm:%s207] %v222
                %v224 = vld [vmem:[%s214 + $0x40] sm:%s207]
                %225 = vst [vmem:[%s215 + $0x20] sm:%s207] %v224
                %v226 = vld [vmem:[%s214 + $0x50] sm:%s207]
                %227 = vst [vmem:[%s215 + $0x28] sm:%s207] %v226
                %v228 = vld [vmem:[%s214 + $0x60] sm:%s207]
                %229 = vst [vmem:[%s215 + $0x30] sm:%s207] %v228
                %v230 = vld [vmem:[%s214 + $0x70] sm:%s207]
                %231 = vst [vmem:[%s215 + $0x38] sm:%s207] %v230
              $region49: #{coordconv_forward.1} parent=43 // loop_footer
                %s213 = sadd.s32 1, %s209
              $region50: #{coordconv_forward.1} parent=43 // loop_footer_branch
                %208 = sbr.rel target = $region46
              $region51: #{coordconv_forward.1} parent=43 // loop_exit
                _
            $region44: #{coordconv_forward.1} parent=35 // pred_fallthru
              _
          $region36: #{coordconv_forward.1} parent=31 // pred_fallthru
            _
          %260 = vnop
        $region32: #{coordconv_forward.1} parent=27 // pred_fallthru
          _
      $region28: #{coordconv_forward.1} parent=5 // pred_fallthru
        _
      %p261 = scmp.le.s32.totalorder 1, %s10
      %p262 = scmp.lt.s32.totalorder %s10, 5
      %p263 = pnand %p261, %p262
      %p264 = pneg %p263
      // Predicated region
      $region67: #{coordconv_forward.1} parent=5 // pred_check
        _
      $region68: #{coordconv_forward.1} parent=5 // pred_check_branch
        %266 = sbr.rel (%p263) target = $region70
      $region69: #{coordconv_forward.1} parent=5 // pred_region
        %s267 = ssub.s32 %s10, 1
        %s268 = sand.u32 %s71, 1
        %s269 = sand.u32 %s71, 1
        %s270 = smul.addr %s269, 64
        %s271 = scalar_lea.vmem [#allocation5], %s270
        // Predicated region
        $region71: #{coordconv_forward.1} parent=69 // pred_check
          %p272 = pneg %p84
        $region72: #{coordconv_forward.1} parent=69 // pred_check_branch
          %274 = sbr.rel (%p272) target = $region74
        $region73: #{coordconv_forward.1} parent=69 // pred_region
          _
        $region74: #{coordconv_forward.1} parent=69 // pred_fallthru
          _
        %p275 = pneg %p50
        %p276 = pneg %p47
        %s277 = sand.u32 %s71, 1
        %s278 = sand.u32 %s71, 1
        %s279 = smul.addr %s278, 64
        %s280 = scalar_lea.vmem [#allocation5], %s279
        %p281 = pneg %p84
        %p282 = pneg %p81
        %p283 = pneg %p105
        %p284 = pneg %p102
        %p285 = pneg %p126
        %p286 = pneg %p123
        %p287 = pneg %p158
        %p288 = pneg %p155
        %s289 = smul.u32 %s21, %s20
        %s290 = smul.u32 %s22, %s20
        %s291 = smul.u32 2, %s290
        %p292 = scmp.lt.s32.totalorder %s289, 1
        %s293 = scalar_select %p292, %s289, 1
        %p294 = scmp.lt.s32.totalorder %s291, 1
        %s295 = scalar_select %p294, %s291, 1
        %s296 = smul.addr %s293, 2
        %s297 = sadd.s32 %s295, %s296
        %s298 = smul.addr %s297, 8
        %s299 = scalar_lea.vmem %s4, %s298
        %s300 = sadd.s32 %s21, %s22
        %s301 = ssub.s32 1, %s20
        %s302 = smul.u32 %s300, %s301
        %s303 = sadd.s32 %s302, %s20
        %s304 = smul.u32 2, %s303
        %s305 = smul.u32 %s21, %s20
        %s306 = smul.u32 %s22, %s20
        %s307 = smul.u32 2, %s306
        %p308 = scmp.lt.s32.totalorder %s305, 1
        %s309 = scalar_select %p308, %s305, 1
        %p310 = scmp.lt.s32.totalorder %s307, 1
        %s311 = scalar_select %p310, %s307, 1
        %s312 = smul.addr %s309, 2
        %s313 = sadd.s32 %s311, %s312
        %s314 = smul.addr %s313, 8
        %s315 = scalar_lea.vmem %s4, %s314
        %s316 = smul.u32 %s21, %s20
        %s317 = smul.u32 %s22, %s20
        %s318 = smul.u32 2, %s317
        %s320 = sadd.s32 %s21, %s22
        %p321 = scmp.eq.s32.totalorder %s20, 0
        // Predicated region
        $region75: #{coordconv_forward.1} parent=69 // pred_check
          %p322 = pneg %p321
        $region76: #{coordconv_forward.1} parent=69 // pred_check_branch
          %324 = sbr.rel (%p322) target = $region78
        $region77: #{coordconv_forward.1} parent=69 // pred_region
          %p325 = scmp.eq.s32.totalorder %s320, 0
          // Predicated region
          $region79: #{coordconv_forward.1} parent=77 // pred_check
            %p326 = pneg %p325
          $region80: #{coordconv_forward.1} parent=77 // pred_check_branch
            %328 = sbr.rel (%p326) target = $region82
          $region81: #{coordconv_forward.1} parent=77 // pred_region
            %vm329 = vcmask 7168
            %330 = vst.msk [vmem:[#allocation3] sm:$0xff] %vm329, 0.0
            %331 = vst.msk [vmem:[#allocation3 + $0x8] sm:$0xff] %vm329, 0.0
            %332 = vst.msk [vmem:[#allocation4] sm:$0xff] %vm329, 0.0
            %333 = vst.msk [vmem:[#allocation4 + $0x8] sm:$0xff] %vm329, 0.0
          $region82: #{coordconv_forward.1} parent=77 // pred_fallthru
            _
          %v334 = vld [vmem:[%s0] sm:$0xf]
          %v335 = vld [vmem:[%s0 + $0x4] sm:$0xf]
          %v336 = vld [vmem:[%s271] sm:$0xff]
          %v337 = vld [vmem:[%s271 + $0x8] sm:$0xff]
          %v338 = vld [vmem:[%s271 + $0x10] sm:$0xff]
          %v339 = vld [vmem:[%s271 + $0x18] sm:$0xff]
          %v340 = vld [vmem:[%s271 + $0x20] sm:$0xff]
          %v341 = vld [vmem:[%s271 + $0x28] sm:$0xff]
          %v342 = vld [vmem:[%s271 + $0x30] sm:$0xff]
          %v343 = vld [vmem:[%s271 + $0x38] sm:$0xff]
          %v346 = vunpack.c.l.b16 %v334
          %v347 = vunpack.c.l.b16 %v335
          %v348 = vpack.c.b16 %v347, %v346
          %v357 = vunpack.c.l.b16 %v336
          %v358 = vunpack.c.h.b16 %v336
          %v359 = vunpack.c.l.b16 %v337
          %v360 = vunpack.c.h.b16 %v337
          %v361 = vunpack.c.l.b16 %v338
          %v362 = vunpack.c.h.b16 %v338
          %v363 = vunpack.c.l.b16 %v339
          %v364 = vunpack.c.h.b16 %v339
          %v365 = vunpack.c.l.b16 %v340
          %v366 = vunpack.c.h.b16 %v340
          %v367 = vunpack.c.l.b16 %v341
          %v368 = vunpack.c.h.b16 %v341
          %v369 = vunpack.c.l.b16 %v342
          %v370 = vunpack.c.h.b16 %v342
          %v371 = vunpack.c.l.b16 %v343
          %v372 = vunpack.c.h.b16 %v343
          %v373 = vpack.c.b16 %v359, %v357
          %v374 = vpack.c.b16 %v360, %v358
          %v375 = vpack.c.b16 %v363, %v361
          %v376 = vpack.c.b16 %v364, %v362
          %v377 = vpack.c.b16 %v367, %v365
          %v378 = vpack.c.b16 %v368, %v366
          %v379 = vpack.c.b16 %v371, %v369
          %v380 = vpack.c.b16 %v372, %v370
          %vm389 = vcmask 523264
          %v391 = vsel %vm389, %v348, 0
          %393 = vmatpush.bf16.msra.mxu0 0
          %394 = vmatpush.bf16.msra.mxu0 0
          %395 = vmatpush.bf16.msra.mxu0 0
          %396 = vmatpush.bf16.msra.mxu0 0
          %397 = vmatpush.bf16.msra.mxu0 %v379
          %398 = vmatpush.bf16.msra.mxu0 %v377
          %399 = vmatpush.bf16.msra.mxu0 %v375
          %400 = vmatpush.bf16.msra.mxu0 %v373
          %401 = vmatmul.bf16.gmra.mxu0 %v391
          %v402 = vpop.f32.mrf.mxu0
          %v403 = vadd.f32 0.0, %v402
          %v404 = vpop.f32.mrf.mxu0
          %v405 = vadd.f32 0.0, %v404
          %406 = vdwg.mxu0
          %407 = vmatpush.bf16.msra.mxu0 0
          %408 = vmatpush.bf16.msra.mxu0 0
          %409 = vmatpush.bf16.msra.mxu0 0
          %410 = vmatpush.bf16.msra.mxu0 0
          %411 = vmatpush.bf16.msra.mxu0 %v380
          %412 = vmatpush.bf16.msra.mxu0 %v378
          %413 = vmatpush.bf16.msra.mxu0 %v376
          %414 = vmatpush.bf16.msra.mxu0 %v374
          %415 = vmatmul.bf16.gmra.mxu0 %v391
          %v416 = vpop.f32.mrf.mxu0
          %v417 = vadd.f32 0.0, %v416
          %v418 = vpop.f32.mrf.mxu0
          %v419 = vadd.f32 0.0, %v418
          %420 = vdwg.mxu0
          %s421 = smul.u32 %s320, 4
          %s422 = smul.addr %s421, 8
          %s423 = scalar_lea.vmem [#allocation2], %s422
          %424 = vst [vmem:[%s423] sm:$0xff] %v403
          %425 = vst [vmem:[%s423 + $0x8] sm:$0xff] %v417
          %426 = vst [vmem:[%s423 + $0x10] sm:$0xff] %v405
          %427 = vst [vmem:[%s423 + $0x18] sm:$0xff] %v419
          %v428 = vld [vmem:[#allocation3] sm:$0xff]
          %v429 = vld [vmem:[#allocation3 + $0x8] sm:$0xff]
          %v430 = vadd.f32 %v403, %v417
          %431 = vadd.xlane.f32.xlu0 %v430
          %v432 = vpop.xlane.xlu0 %431
          %v433 = vadd.f32 %v405, %v419
          %434 = vadd.xlane.f32.xlu0 %v433
          %v435 = vpop.xlane.xlu0 %434
          %v436 = vadd.f32 %v428, %v432
          %v437 = vadd.f32 %v429, %v435
          %vm438 = vcmask 7168
          %439 = vst.msk [vmem:[#allocation3] sm:$0xff] %vm438, %v436
          %440 = vst.msk [vmem:[#allocation3 + $0x8] sm:$0xff] %vm438, %v437
          %v441 = vld [vmem:[#allocation4] sm:$0xff]
          %v442 = vld [vmem:[#allocation4 + $0x8] sm:$0xff]
          %v443 = vmul.f32 %v403, %v403
          %v444 = vmul.f32 %v417, %v417
          %v445 = vmul.f32 %v405, %v405
          %v446 = vmul.f32 %v419, %v419
          %v447 = vadd.f32 %v443, %v444
          %448 = vadd.xlane.f32.xlu0 %v447
          %v449 = vpop.xlane.xlu0 %448
          %v450 = vadd.f32 %v445, %v446
          %451 = vadd.xlane.f32.xlu0 %v450
          %v452 = vpop.xlane.xlu0 %451
          %v453 = vadd.f32 %v441, %v449
          %v454 = vadd.f32 %v442, %v452
          %455 = vst.msk [vmem:[#allocation4] sm:$0xff] %vm438, %v453
          %456 = vst.msk [vmem:[#allocation4 + $0x8] sm:$0xff] %vm438, %v454
        $region78: #{coordconv_forward.1} parent=69 // pred_fallthru
          _
        %p457 = scmp.eq.s32.totalorder %s20, 1
        // Predicated region
        $region83: #{coordconv_forward.1} parent=69 // pred_check
          %p458 = pneg %p457
        $region84: #{coordconv_forward.1} parent=69 // pred_check_branch
          %460 = sbr.rel (%p458) target = $region86
        $region85: #{coordconv_forward.1} parent=69 // pred_region
          %v461 = vld [vmem:[#allocation3] sm:$0xff]
          %v462 = vmul.f32 %v461, 0.001953125
          %v463 = vld [vmem:[#allocation4] sm:$0xff]
          %v464 = vmul.f32 %v463, 0.001953125
          %v465 = vmul.f32 %v462, %v462
          %v466 = vsub.f32 %v464, %v465
          %v467 = vmax.f32 %v466, 0.0
          %v468 = vld [vmem:[%s2] sm:$0xff]
          %v469 = vadd.f32 %v467, 1e-05
          %v470 = vrsqrt.pop %v469
          %v471 = vmul.f32 %v470, %v469
          %v472 = vmul.f32 %v471, %v470
          %v473 = vmul.f32 0.5, %v472
          %v474 = vsub.f32 1.5, %v473
          %v475 = vmul.f32 %v470, %v474
          %vm476 = vweird.f32 %v469
          %vm477 = vweird.f32 %v470
          %vm478 = vmor %vm476, %vm477
          %v479 = vsel %vm478, %v470, %v475
          %v480 = vmul.f32 %v468, %v479
          %v481 = vld [vmem:[%s3] sm:$0xff]
          %v482 = vmul.f32 %v462, %v480
          %v483 = vsub.f32 %v481, %v482
          %s484 = smul.u32 %s320, 4
          %s485 = smul.addr %s484, 8
          %s486 = scalar_lea.vmem [#allocation2], %s485
          %v487 = vld [vmem:[%s486] sm:$0xff]
          %v488 = vld [vmem:[%s486 + $0x8] sm:$0xff]
          %490 = vset.pattern.permute.xlu0 0
          %491 = vperm.xlu0 %490, %v480
          %v492 = vpop.permute.xlu0 %491
          %v494 = vmul.f32 %v487, %v492
          %v495 = vmul.f32 %v488, %v492
          %497 = vset.pattern.permute.xlu0 0
          %498 = vperm.xlu0 %497, %v483
          %v499 = vpop.permute.xlu0 %498
          %v501 = vadd.f32 %v494, %v499
          %v502 = vadd.f32 %v495, %v499
          %v503 = vmax.f32 %v501, 0.0
          %v504 = vmax.f32 %v502, 0.0
          %505 = vst [vmem:[%s315] sm:$0xff] %v503
          %506 = vst [vmem:[%s315 + $0x8] sm:$0xff] %v504
        $region86: #{coordconv_forward.1} parent=69 // pred_fallthru
          _
        %s507 = smul.u32 %s21, %s20
        %s508 = smul.u32 %s22, %s20
        %s509 = smul.u32 2, %s508
        %p510 = scmp.lt.s32.totalorder %s507, 1
        %s511 = scalar_select %p510, %s507, 1
        %p512 = scmp.lt.s32.totalorder %s509, 1
        %s513 = scalar_select %p512, %s509, 1
        %s514 = smul.addr %s511, 2
        %s515 = sadd.s32 %s513, %s514
        %s516 = smul.addr %s515, 8
        %s517 = scalar_lea.vmem %s4, %s516
        // Predicated region
        $region87: #{coordconv_forward.1} parent=69 // pred_check
          %p518 = pneg %p155
        $region88: #{coordconv_forward.1} parent=69 // pred_check_branch
          %520 = sbr.rel (%p518) target = $region90
        $region89: #{coordconv_forward.1} parent=69 // pred_region
          %s521 = smul.u32 %s21, %s20
          %s522 = smul.u32 %s22, %s20
          %s523 = smul.u32 2, %s522
        $region90: #{coordconv_forward.1} parent=69 // pred_fallthru
          _
      $region70: #{coordconv_forward.1} parent=5 // pred_fallthru
        _
      %p524 = scmp.le.s32.totalorder 2, %s10
      // Predicated region
      $region91: #{coordconv_forward.1} parent=5 // pred_check
        %p525 = pneg %p524
      $region92: #{coordconv_forward.1} parent=5 // pred_check_branch
        %527 = sbr.rel (%p525) target = $region94
      $region93: #{coordconv_forward.1} parent=5 // pred_region
        %s528 = ssub.s32 %s10, 2
        // Predicated region
        $region95: #{coordconv_forward.1} parent=93 // pred_check
          %p529 = pneg %p161
        $region96: #{coordconv_forward.1} parent=93 // pred_check_branch
          %531 = sbr.rel (%p529) target = $region98
        $region97: #{coordconv_forward.1} parent=93 // pred_region
          %s532 = smul.u32 %s24, %s23
          %s533 = smul.u32 %s25, %s23
          %s534 = smul.u32 2, %s533
          %p535 = scmp.lt.s32.totalorder %s532, 1
          %s536 = scalar_select %p535, %s532, 1
          %p537 = scmp.lt.s32.totalorder %s534, 1
          %s538 = scalar_select %p537, %s534, 1
          %s539 = smul.addr %s536, 2
          %s540 = sadd.s32 %s538, %s539
          %s541 = smul.addr %s540, 8
          %s542 = scalar_lea.vmem %s4, %s541
        $region98: #{coordconv_forward.1} parent=93 // pred_fallthru
          _
      $region94: #{coordconv_forward.1} parent=5 // pred_fallthru
        _
    $region6: #{coordconv_forward.1} parent=1 // loop_footer
      %s14 = sadd.s32 1, %s10
    $region7: #{coordconv_forward.1} parent=1 // loop_footer_branch
      %9 = sbr.rel target = $region3
    $region8: #{coordconv_forward.1} parent=1 // loop_exit
      _

</llo_original>
